<compile_context>
chip_gen: v6e
topology: v6e:2x2x1
jax: 0.10.0
libtpu: 0.0.40
codegen_flags: <defaults>
</compile_context>

<pallas_src>
import math
from functools import partial

import jax
import jax.numpy as jnp
from jax.experimental import pallas as pl
from jax.experimental.pallas import tpu as pltpu


# ----------------------------- Pallas kernel --------------------------------

def _conv_bn_relu_kernel(x_ref,   # (C_in, block_l)   f32 activations (batch squeezed)
                         w_ref,   # (C_out, C_in)     folded conv*BN weight (bf16)
                         b_ref,   # (C_out, 1)        folded conv*BN bias (f32)
                         o_ref):  # (C_out, block_l)  output (bf16 by default)
    # In-kernel cast to the MXU dtype (free on the VPU for a mem-bound kernel).
    x = x_ref[...].astype(w_ref.dtype)
    # One matmul per grid step: M=C_out (sublanes), K=C_in, N=block_l (lanes).
    y = jnp.dot(w_ref[...], x, preferred_element_type=jnp.float32)
    # Bias + ReLU fused, then narrow-store (lane-dense, unmasked vst).
    o_ref[...] = jnp.maximum(y + b_ref[...], 0.0).astype(o_ref.dtype)


# ----------------------------- host wrapper ----------------------------------

def _choose_block_l(L, cap=2048):
    """Largest lane-dense length tile: full L if small, else a multiple of 128
    that divides L, else fall back to full L (BlockSpec allows full-dim blocks)."""
    if L <= cap:
        return L
    for bl in range(cap, 127, -128):
        if L % bl == 0:
            return bl
    return L


@partial(jax.jit,
         static_argnames=("eps", "block_l", "out_dtype", "matmul_dtype"))
def conv_block(x, conv_w, conv_b, bn_gamma, bn_beta, bn_mean, bn_var,
               *, eps=1e-5, block_l=None,
               out_dtype=jnp.bfloat16, matmul_dtype=jnp.bfloat16):
    """Fused Conv1d(k=1) + BatchNorm1d(eval) + ReLU.

    x:       (B, C_in, L)           float32, channel-first (PyTorch layout)
    conv_w:  (C_out, C_in, 1) or (C_out, C_in)
    conv_b:  (C_out,)
    bn_*:    (C_out,)  gamma/beta/running_mean/running_var
    returns: (B, C_out, L) in out_dtype (f32 accumulation inside the kernel)
    """
    B, C_in, L = x.shape
    w2 = conv_w[..., 0] if conv_w.ndim == 3 else conv_w          # (C_out, C_in)
    C_out = w2.shape[0]

    if block_l is None:
        block_l = _choose_block_l(L)
    assert L % block_l == 0, "L must be divisible by block_l"
    assert block_l == L or block_l % 128 == 0, \
        "length tile must be lane-dense (multiple of 128) or the full length"

    # Fold BN (running stats) into the conv: BN(Wx+b) = (s*W)x + s*(b-mean)+beta
    scale = bn_gamma * jax.lax.rsqrt(bn_var + eps)               # (C_out,)
    w_fused = (w2 * scale[:, None]).astype(matmul_dtype)         # (C_out, C_in)
    b_fused = ((conv_b - bn_mean) * scale + bn_beta).astype(jnp.float32)
    b_fused = b_fused.reshape(C_out, 1)                          # per-sublane bias

    # VMEM budget from the actual tile footprint (double-buffered in/out),
    # generous headroom but well under v7x's 64 MiB physical VMEM.
    in_bytes = C_in * block_l * x.dtype.itemsize
    out_bytes = C_out * block_l * jnp.dtype(out_dtype).itemsize
    w_bytes = C_out * C_in * jnp.dtype(matmul_dtype).itemsize + C_out * 4
    vmem_limit = 2 * (2 * (in_bytes + out_bytes) + w_bytes) + (8 << 20)
    vmem_limit = int(min(max(vmem_limit, 16 << 20), 96 << 20))

    grid = (B, L // block_l)   # batch axis keeps >=2 parallel steps for v7x megacore
    out = pl.pallas_call(
        _conv_bn_relu_kernel,
        out_shape=jax.ShapeDtypeStruct((B, C_out, L), out_dtype),
        grid_spec=pltpu.PrefetchScalarGridSpec(
            num_scalar_prefetch=0,
            grid=grid,
            in_specs=[
                # activations: batch squeezed, full channel dim, large length tile
                pl.BlockSpec((pl.Squeezed(), C_in, block_l),
                             lambda bi, li: (bi, 0, li)),
                # grid-constant folded weight / bias
                pl.BlockSpec((C_out, C_in), lambda bi, li: (0, 0)),
                pl.BlockSpec((C_out, 1), lambda bi, li: (0, 0)),
            ],
            out_specs=pl.BlockSpec((pl.Squeezed(), C_out, block_l),
                                   lambda bi, li: (bi, 0, li)),
        ),
        compiler_params=pltpu.CompilerParams(
            dimension_semantics=("parallel", "parallel"),
            vmem_limit_bytes=vmem_limit,
        ),
    )(x, w_fused, b_fused)
    return out


# ----------------------------- pure-JAX reference ----------------------------

def reference(x, conv_w, conv_b, bn_gamma, bn_beta, bn_mean, bn_var, eps=1e-5):
    w2 = conv_w[..., 0] if conv_w.ndim == 3 else conv_w
    y = jnp.einsum('oc,bcl->bol', w2, x) + conv_b[None, :, None]
    inv = bn_gamma / jnp.sqrt(bn_var + eps)
    y = (y - bn_mean[None, :, None]) * inv[None, :, None] + bn_beta[None, :, None]
    return jnp.maximum(y, 0.0)


# ---------------------------------- main -------------------------------------

if __name__ == "__main__":
    B, C_IN, C_OUT, L = 4, 16, 32, 256

    key = jax.random.PRNGKey(0)
    ks = jax.random.split(key, 7)
    x = jax.random.normal(ks[0], (B, C_IN, L), jnp.float32)

    # PyTorch-style Conv1d init: uniform(+-1/sqrt(fan_in)), fan_in = C_in * k
    bound = 1.0 / math.sqrt(C_IN)
    conv_w = jax.random.uniform(ks[1], (C_OUT, C_IN, 1), jnp.float32, -bound, bound)
    conv_b = jax.random.uniform(ks[2], (C_OUT,), jnp.float32, -bound, bound)

    # Non-trivial BN parameters / running statistics (inference mode).
    bn_gamma = jax.random.uniform(ks[3], (C_OUT,), jnp.float32, 0.8, 1.2)
    bn_beta = 0.1 * jax.random.normal(ks[4], (C_OUT,), jnp.float32)
    bn_mean = 0.1 * jax.random.normal(ks[5], (C_OUT,), jnp.float32)
    bn_var = jax.random.uniform(ks[6], (C_OUT,), jnp.float32, 0.5, 1.5)

    out = conv_block(x, conv_w, conv_b, bn_gamma, bn_beta, bn_mean, bn_var)
    out = jax.block_until_ready(out)

    ref = reference(x, conv_w, conv_b, bn_gamma, bn_beta, bn_mean, bn_var)
    assert out.shape == (B, C_OUT, L)
    out_f32 = out.astype(jnp.float32)
    max_err = float(jnp.max(jnp.abs(out_f32 - ref)))
    # bf16 MXU operands + bf16 output -> tolerance (observed errors ~1e-2 scale).
    assert jnp.allclose(out_f32, ref, atol=5e-2, rtol=5e-2), \
        f"mismatch: max|err|={max_err}"

    print("KERNEL_OK")
</pallas_src>

<mosaic_0001>
module attributes {stable_mosaic.version = 11 : i64} {
  func.func @_conv_bn_relu_kernel(%arg0: i32, %arg1: i32, %arg2: memref<1x16x256xf32, #tpu.memory_space<vmem>>, %arg3: memref<32x16xbf16, #tpu.memory_space<vmem>>, %arg4: memref<32x1xf32, #tpu.memory_space<vmem>>, %arg5: memref<1x32x256xbf16, #tpu.memory_space<vmem>>) attributes {dimension_semantics = [#tpu.dimension_semantics<parallel>, #tpu.dimension_semantics<parallel>], iteration_bounds = array<i64: 4, 1>, scalar_prefetch = 0 : i64, scratch_operands = 0 : i64, tpu.core_type = #tpu.core_type<tc>, window_params = [{transform_indices = @transform_0, window_bounds = array<i64: 1, 16, 256>}, {pipeline_mode = #tpu.pipeline_mode<synchronous>, transform_indices = @transform_1, window_bounds = array<i64: 32, 16>}, {pipeline_mode = #tpu.pipeline_mode<synchronous>, transform_indices = @transform_2, window_bounds = array<i64: 32, 1>}, {transform_indices = @transform_3, window_bounds = array<i64: 1, 32, 256>}]} {
    %c0 = arith.constant 0 : index
    %c0_0 = arith.constant 0 : index
    %c0_1 = arith.constant 0 : index
    %0 = vector.load %arg2[%c0, %c0_0, %c0_1] : memref<1x16x256xf32, #tpu.memory_space<vmem>>, vector<1x16x256xf32>
    %1 = vector.shape_cast %0 : vector<1x16x256xf32> to vector<16x256xf32>
    %2 = arith.truncf %1 : vector<16x256xf32> to vector<16x256xbf16>
    %c0_2 = arith.constant 0 : index
    %c0_3 = arith.constant 0 : index
    %3 = vector.load %arg3[%c0_2, %c0_3] : memref<32x16xbf16, #tpu.memory_space<vmem>>, vector<32x16xbf16>
    %cst = arith.constant dense<0.000000e+00> : vector<32x256xf32>
    %4 = tpu.matmul %3, %2, %cst {dimension_numbers = #tpu.dot_dimension_numbers<[1], [0], [0], [1], [0, 0, 1, 1], [], []>} : vector<32x16xbf16>, vector<16x256xbf16>, vector<32x256xf32> -> vector<32x256xf32>
    %c0_4 = arith.constant 0 : index
    %c0_5 = arith.constant 0 : index
    %5 = vector.load %arg4[%c0_4, %c0_5] : memref<32x1xf32, #tpu.memory_space<vmem>>, vector<32x1xf32>
    %6 = vector.broadcast %5 : vector<32x1xf32> to vector<32x256xf32>
    %7 = arith.addf %4, %6 : vector<32x256xf32>
    %cst_6 = arith.constant 0.000000e+00 : f32
    %8 = vector.broadcast %cst_6 : f32 to vector<32x256xf32>
    %9 = arith.maximumf %7, %8 : vector<32x256xf32>
    %10 = arith.truncf %9 : vector<32x256xf32> to vector<32x256xbf16>
    %c0_7 = arith.constant 0 : index
    %c0_8 = arith.constant 0 : index
    %c0_9 = arith.constant 0 : index
    %11 = vector.load %arg5[%c0_7, %c0_8, %c0_9] : memref<1x32x256xbf16, #tpu.memory_space<vmem>>, vector<1x32x256xbf16>
    %12 = vector.shape_cast %11 : vector<1x32x256xbf16> to vector<32x256xbf16>
    %13 = vector.shape_cast %10 : vector<32x256xbf16> to vector<1x32x256xbf16>
    tpu.vector_store %arg5[%c0_7, %c0_8, %c0_9], %13 {strides = array<i32>} : memref<1x32x256xbf16, #tpu.memory_space<vmem>>, vector<1x32x256xbf16>,
    return
  }
  func.func @transform_0(%arg0: i32, %arg1: i32) -> (i32, i32, i32) {
    %c0_i32 = arith.constant 0 : i32
    %c0_i32_0 = arith.constant 0 : i32
    return %arg0, %c0_i32, %arg1 : i32, i32, i32
  }
  func.func @transform_1(%arg0: i32, %arg1: i32) -> (i32, i32) {
    %c0_i32 = arith.constant 0 : i32
    %c0_i32_0 = arith.constant 0 : i32
    %c0_i32_1 = arith.constant 0 : i32
    return %c0_i32, %c0_i32_0 : i32, i32
  }
  func.func @transform_2(%arg0: i32, %arg1: i32) -> (i32, i32) {
    %c0_i32 = arith.constant 0 : i32
    %c0_i32_0 = arith.constant 0 : i32
    %c0_i32_1 = arith.constant 0 : i32
    return %c0_i32, %c0_i32_0 : i32, i32
  }
  func.func @transform_3(%arg0: i32, %arg1: i32) -> (i32, i32, i32) {
    %c0_i32 = arith.constant 0 : i32
    %c0_i32_0 = arith.constant 0 : i32
    return %arg0, %c0_i32, %arg1 : i32, i32, i32
  }
}

</mosaic_0001>

<llo_original>
// kernel: conv_block.1
$region0: #{conv_block.1}
  #allocation0 [shape = 'u32[]', space=smem, size = 0x4, offset = 0x4, fixed_abs, tag = 'smem constant byte address 0x4 - core index']
  #allocation1 [shape = 'u32[144,128]{1,0:T(1,128)}', space=vmem, size = 0x12000, scoped, tag = 'internal scratch']
  %s0 = inlined_call_operand.vmem [shape: f32[4,16,256], index: 0, kind: input, shape index: {}]
  %s1 = inlined_call_operand.vmem [shape: bf16[32,16], index: 1, kind: input, shape index: {}]
  %s2 = inlined_call_operand.vmem [shape: f32[32,1], index: 2, kind: input, shape index: {}]
  %s3 = inlined_call_operand.hbm [shape: bf16[4,32,256], index: 3, kind: output, shape index: {}]
  %s4 = sld [smem:[#allocation0]]
  $region45: #{conv_block.1} parent=0
    _
  %s6 = ssub.s32 1, %s4
  %s7 = scalar_select 0, %s6, %s4
  $region1: #{conv_block.1} parent=0
    #allocation2 [shape = 'u8[32768]{0}', space=vmem, size = 0x8000, scoped, tag = 'output window, operand 0']
    #allocation3 [shape = 's32[2]{0}', space=sflag, size = 0x8, scoped, tag = 'scoped memory for conv_block.1']
    %8 = vsyncpa [#allocation3], 0
    %s9 = scalar_lea.sflag [#allocation3], 1
    %10 = vsyncpa %s9, 0
    loop: start=0, step=1, limit=6
    $region2: #{conv_block.1} parent=1 // loop_pre_header
      _
    $region3: #{conv_block.1} parent=1 // loop_header
      %s12 = sphi 0, %s16
      %p13 = scmp.ge.s32.totalorder %s12, 6
      %s19 = sphi 0, %s31
      %s20 = sphi 0, %s27
      %s21 = sphi 0, %s19
      %s22 = sphi 0, %s20
      %s23 = sphi 0, %s21
      %s24 = sphi 0, %s22
      %s36 = sphi 0, %s38
      %s39 = sphi 0, %s36
      %s40 = sphi 0, %s39
      %s56 = sphi 0, %s40
      %s60 = sphi 0, %s60
      %s62 = sphi 0, %s60
      %s63 = sphi 0, %s62
      %s77 = sphi 0, %s63
      %s81 = sphi 0, %s81
      %s83 = sphi 0, %s81
      %s84 = sphi 0, %s83
      %s98 = sphi 0, %s84
      %s106 = sphi 0, %s108
      %s109 = sphi 0, %s106
      %s110 = sphi 0, %s109
      %s126 = sphi 0, %s110
    $region4: #{conv_block.1} parent=1 // loop_header_branch
      %15 = sbr.rel (%p13) target = $region8
    $region5: #{conv_block.1} parent=1 // loop_body
      %s17 = ssub.s32 %s12, 1
      %s18 = ssub.s32 %s12, 2
      %s25 = sadd.s32 1, %s20
      %p26 = scmp.ge.s32.totalorder %s25, 1
      %s27 = scalar_select %p26, 0, %s25
      %s28 = sadd.s32 1, %s19
      %s29 = scalar_select %p26, %s28, %s19
      %p30 = scmp.ge.s32.totalorder %s29, 4
      %s31 = scalar_select %p30, 0, %s29
      %s32 = ssub.s32 %s19, %s31
      %s33 = ssub.s32 %s20, %s27
      %s34 = sor.u32 %s32, %s33
      %p35 = scmp.eq.s32.totalorder %s34, 0
      %s37 = sadd.s32 %s36, 1
      %s38 = scalar_select %p35, %s36, %s37
      %p41 = pneg %p35
      %p42 = scmp.eq.s32.totalorder %s12, 3
      %p43 = por %p41, %p42
      %p44 = scmp.ne.s32.totalorder %s36, %s39
      %p45 = scmp.eq.s32.totalorder %s12, 0
      %p46 = por %p44, %p45
      %p47 = scmp.ne.s32.totalorder %s36, %s39
      %p48 = scmp.eq.s32.totalorder %s17, 3
      %p49 = por %p47, %p48
      %p50 = scmp.ne.s32.totalorder %s39, %s40
      %p51 = scmp.eq.s32.totalorder %s17, 0
      %p52 = por %p50, %p51
      %p53 = scmp.ne.s32.totalorder %s39, %s40
      %p54 = scmp.eq.s32.totalorder %s18, 3
      %p55 = por %p53, %p54
      %p57 = scmp.ne.s32.totalorder %s40, %s56
      %p58 = scmp.eq.s32.totalorder %s18, 0
      %p59 = por %p57, %p58
      %s61 = sadd.s32 %s60, 1
      %p64 = scmp.eq.s32.totalorder %s12, 3
      %p65 = scmp.ne.s32.totalorder %s60, %s62
      %p66 = scmp.eq.s32.totalorder %s12, 0
      %p67 = por %p65, %p66
      %p68 = scmp.ne.s32.totalorder %s60, %s62
      %p69 = scmp.eq.s32.totalorder %s17, 3
      %p70 = por %p68, %p69
      %p71 = scmp.ne.s32.totalorder %s62, %s63
      %p72 = scmp.eq.s32.totalorder %s17, 0
      %p73 = por %p71, %p72
      %p74 = scmp.ne.s32.totalorder %s62, %s63
      %p75 = scmp.eq.s32.totalorder %s18, 3
      %p76 = por %p74, %p75
      %p78 = scmp.ne.s32.totalorder %s63, %s77
      %p79 = scmp.eq.s32.totalorder %s18, 0
      %p80 = por %p78, %p79
      %s82 = sadd.s32 %s81, 1
      %p85 = scmp.eq.s32.totalorder %s12, 3
      %p86 = scmp.ne.s32.totalorder %s81, %s83
      %p87 = scmp.eq.s32.totalorder %s12, 0
      %p88 = por %p86, %p87
      %p89 = scmp.ne.s32.totalorder %s81, %s83
      %p90 = scmp.eq.s32.totalorder %s17, 3
      %p91 = por %p89, %p90
      %p92 = scmp.ne.s32.totalorder %s83, %s84
      %p93 = scmp.eq.s32.totalorder %s17, 0
      %p94 = por %p92, %p93
      %p95 = scmp.ne.s32.totalorder %s83, %s84
      %p96 = scmp.eq.s32.totalorder %s18, 3
      %p97 = por %p95, %p96
      %p99 = scmp.ne.s32.totalorder %s84, %s98
      %p100 = scmp.eq.s32.totalorder %s18, 0
      %p101 = por %p99, %p100
      %s102 = ssub.s32 %s19, %s31
      %s103 = ssub.s32 %s20, %s27
      %s104 = sor.u32 %s102, %s103
      %p105 = scmp.eq.s32.totalorder %s104, 0
      %s107 = sadd.s32 %s106, 1
      %s108 = scalar_select %p105, %s106, %s107
      %p111 = pneg %p105
      %p112 = scmp.eq.s32.totalorder %s12, 3
      %p113 = por %p111, %p112
      %p114 = scmp.ne.s32.totalorder %s106, %s109
      %p115 = scmp.eq.s32.totalorder %s12, 0
      %p116 = por %p114, %p115
      %p117 = scmp.ne.s32.totalorder %s106, %s109
      %p118 = scmp.eq.s32.totalorder %s17, 3
      %p119 = por %p117, %p118
      %p120 = scmp.ne.s32.totalorder %s109, %s110
      %p121 = scmp.eq.s32.totalorder %s17, 0
      %p122 = por %p120, %p121
      %p123 = scmp.ne.s32.totalorder %s109, %s110
      %p124 = scmp.eq.s32.totalorder %s18, 3
      %p125 = por %p123, %p124
      %p127 = scmp.ne.s32.totalorder %s110, %s126
      %p128 = scmp.eq.s32.totalorder %s18, 0
      %p129 = por %p127, %p128
      %p130 = scmp.le.s32.totalorder 1, %s12
      %p131 = scmp.lt.s32.totalorder %s12, 5
      %p132 = pnand %p130, %p131
      %p133 = pneg %p132
      // Predicated region
      $region9: #{conv_block.1} parent=5 // pred_check
        _
      $region10: #{conv_block.1} parent=5 // pred_check_branch
        %135 = sbr.rel (%p132) target = $region12
      $region11: #{conv_block.1} parent=5 // pred_region
        %s136 = ssub.s32 %s12, 1
        // Predicated region
        $region13: #{conv_block.1} parent=11 // pred_check
          %p137 = pneg %p73
        $region14: #{conv_block.1} parent=11 // pred_check_branch
          %139 = sbr.rel (%p137) target = $region16
        $region15: #{conv_block.1} parent=11 // pred_region
          _
        $region16: #{conv_block.1} parent=11 // pred_fallthru
          _
        // Predicated region
        $region17: #{conv_block.1} parent=11 // pred_check
          %p140 = pneg %p94
        $region18: #{conv_block.1} parent=11 // pred_check_branch
          %142 = sbr.rel (%p140) target = $region20
        $region19: #{conv_block.1} parent=11 // pred_region
          _
        $region20: #{conv_block.1} parent=11 // pred_fallthru
          _
      $region12: #{conv_block.1} parent=5 // pred_fallthru
        _
      %p143 = scmp.lt.s32.totalorder %s12, 4
      // Predicated region
      $region21: #{conv_block.1} parent=5 // pred_check
        %p144 = pneg %p143
      $region22: #{conv_block.1} parent=5 // pred_check_branch
        %146 = sbr.rel (%p144) target = $region24
      $region23: #{conv_block.1} parent=5 // pred_region
        // Predicated region
        $region25: #{conv_block.1} parent=23 // pred_check
          %p147 = pneg %p46
        $region26: #{conv_block.1} parent=23 // pred_check_branch
          %149 = sbr.rel (%p147) target = $region28
        $region27: #{conv_block.1} parent=23 // pred_region
          %s150 = smul.u32 2, %s20
          %p151 = scmp.lt.s32.totalorder %s19, 3
          %s152 = scalar_select %p151, %s19, 3
          %p153 = scmp.lt.s32.totalorder %s150, 1
          %s154 = scalar_select %p153, %s150, 1
          %s155 = smul.addr %s152, 4
          %s156 = sadd.s32 %s154, %s155
          %s157 = smul.addr %s156, 8
          %s158 = scalar_lea.vmem %s0, %s157
          %s159 = smul.u32 2, %s20
        $region28: #{conv_block.1} parent=23 // pred_fallthru
          _
      $region24: #{conv_block.1} parent=5 // pred_fallthru
        _
      %p160 = scmp.le.s32.totalorder 1, %s12
      %p161 = scmp.lt.s32.totalorder %s12, 5
      %p162 = pnand %p160, %p161
      %p163 = pneg %p162
      // Predicated region
      $region29: #{conv_block.1} parent=5 // pred_check
        _
      $region30: #{conv_block.1} parent=5 // pred_check_branch
        %165 = sbr.rel (%p162) target = $region32
      $region31: #{conv_block.1} parent=5 // pred_region
        %s166 = ssub.s32 %s12, 1
        %s167 = smul.u32 2, %s22
        %p168 = scmp.lt.s32.totalorder %s21, 3
        %s169 = scalar_select %p168, %s21, 3
        %p170 = scmp.lt.s32.totalorder %s167, 1
        %s171 = scalar_select %p170, %s167, 1
        %s172 = smul.addr %s169, 4
        %s173 = sadd.s32 %s171, %s172
        %s174 = smul.addr %s173, 8
        %s175 = scalar_lea.vmem %s0, %s174
        %p176 = pneg %p52
        %p177 = pneg %p49
        %p178 = pneg %p73
        %p179 = pneg %p70
        %p180 = pneg %p94
        %p181 = pneg %p91
        %p182 = pneg %p122
        %p183 = pneg %p119
        %s184 = sand.u32 %s109, 1
        %s185 = scalar_lea.sflag [#allocation3], %s184
        %s186 = sand.u32 %s109, 1
        %s187 = smul.addr %s186, 32
        %s188 = scalar_lea.vmem [#allocation2], %s187
        %s189 = smul.u32 2, %s22
        %p190 = scmp.lt.s32.totalorder %s21, 3
        %s191 = scalar_select %p190, %s21, 3
        %p192 = scmp.lt.s32.totalorder %s189, 1
        %s193 = scalar_select %p192, %s189, 1
        %s194 = smul.addr %s191, 4
        %s195 = sadd.s32 %s193, %s194
        %s196 = smul.addr %s195, 8
        %s197 = scalar_lea.vmem %s0, %s196
        %s198 = smul.u32 2, %s22
        %s199 = smul.u32 2, %s22
        %v201 = vld [vmem:[%s197] sm:$0xff]
        %v202 = vld [vmem:[%s197 + $0x8] sm:$0xff]
        %v203 = vld [vmem:[%s197 + $0x10] sm:$0xff]
        %v204 = vld [vmem:[%s197 + $0x18] sm:$0xff]
        %v205 = vpack.c.bf16 %v203, %v201
        %v206 = vpack.c.bf16 %v204, %v202
        %v207 = vld [vmem:[%s1] sm:$0xf]
        %v208 = vld [vmem:[%s1 + $0x4] sm:$0xf]
        %v209 = vld [vmem:[%s1 + $0x8] sm:$0xf]
        %v210 = vld [vmem:[%s1 + $0xc] sm:$0xf]
        %v211 = vld [vmem:[%s2] sm:$0xff]
        %v212 = vld [vmem:[%s2 + $0x8] sm:$0xff]
        %v213 = vld [vmem:[%s2 + $0x10] sm:$0xff]
        %v214 = vld [vmem:[%s2 + $0x18] sm:$0xff]
        %216 = vset.pattern.permute.xlu0 0
        %217 = vperm.xlu0 %216, %v211
        %v218 = vpop.permute.xlu0 %217
        %221 = vset.pattern.permute.xlu0 0
        %222 = vperm.xlu0 %221, %v212
        %v223 = vpop.permute.xlu0 %222
        %226 = vset.pattern.permute.xlu0 0
        %227 = vperm.xlu0 %226, %v213
        %v228 = vpop.permute.xlu0 %227
        %231 = vset.pattern.permute.xlu0 0
        %232 = vperm.xlu0 %231, %v214
        %v233 = vpop.permute.xlu0 %232
        %v239 = vunpack.c.l.b16 %v207
        %v240 = vunpack.c.l.b16 %v208
        %v241 = vunpack.c.l.b16 %v209
        %v242 = vunpack.c.l.b16 %v210
        %v243 = vpack.c.b16 %v240, %v239
        %v244 = vpack.c.b16 %v242, %v241
        %vm245 = vcmask 130048
        %v247 = vsel %vm245, %v243, 0
        %v250 = vsel %vm245, %v244, 0
        %252 = vmatprep.subr.bf16.mxu0 0
        %253 = vmatpush1.bf16.msra.mxu0 0
        %254 = vmatprep.subr.bf16.mxu0 0
        %255 = vmatpush1.bf16.msra.mxu0 0
        %256 = vmatprep.subr.bf16.mxu0 0
        %257 = vmatpush1.bf16.msra.mxu0 0
        %258 = vmatprep.subr.bf16.mxu0 0
        %259 = vmatpush1.bf16.msra.mxu0 0
        %260 = vmatprep.subr.bf16.mxu0 0
        %261 = vmatpush1.bf16.msra.mxu0 0
        %262 = vmatprep.subr.bf16.mxu0 0
        %263 = vmatpush1.bf16.msra.mxu0 0
        %264 = vmatprep.subr.bf16.mxu0 0
        %265 = vmatpush1.bf16.msra.mxu0 0
        %266 = vmatprep.subr.bf16.mxu0 %v206
        %267 = vmatpush1.bf16.msra.mxu0 %v205
        %268 = vmatprep.subr.bf16.mxu0 0
        %269 = vmatpush2.bf16.msra.mxu0 0
        %270 = vmatprep.subr.bf16.mxu0 0
        %271 = vmatpush2.bf16.msra.mxu0 0
        %272 = vmatprep.subr.bf16.mxu0 0
        %273 = vmatpush2.bf16.msra.mxu0 0
        %274 = vmatprep.subr.bf16.mxu0 0
        %275 = vmatpush2.bf16.msra.mxu0 0
        %276 = vmatprep.subr.bf16.mxu0 0
        %277 = vmatpush2.bf16.msra.mxu0 0
        %278 = vmatprep.subr.bf16.mxu0 0
        %279 = vmatpush2.bf16.msra.mxu0 0
        %280 = vmatprep.subr.bf16.mxu0 0
        %281 = vmatpush2.bf16.msra.mxu0 0
        %282 = vmatprep.subr.bf16.mxu0 0
        %283 = vmatpush2.bf16.msra.mxu0 0
        %284 = vmatprep.mubr.bf16.mxu0 0
        %285 = vmatmul.mubr.bf16.gmra.mxu0 %v247
        %v286 = vpop.f32.mrf.mxu0
        %v287 = vadd.f32 %v218, %v286
        %v288 = vpop.f32.mrf.mxu0
        %v289 = vadd.f32 %v218, %v288
        %v290 = vpop.f32.mrf.mxu0
        %v291 = vadd.f32 %v223, %v290
        %v292 = vpop.f32.mrf.mxu0
        %v293 = vadd.f32 %v223, %v292
        %294 = vmatprep.mubr.bf16.mxu0 0
        %295 = vmatmul.mubr.bf16.gmra.mxu0 %v250
        %v296 = vpop.f32.mrf.mxu0
        %v297 = vadd.f32 %v228, %v296
        %v298 = vpop.f32.mrf.mxu0
        %v299 = vadd.f32 %v228, %v298
        %v300 = vpop.f32.mrf.mxu0
        %v301 = vadd.f32 %v233, %v300
        %v302 = vpop.f32.mrf.mxu0
        %v303 = vadd.f32 %v233, %v302
        %304 = vdwg.mxu0
        %v305 = vmax.f32 %v287, 0.0
        %v306 = vmax.f32 %v289, 0.0
        %v307 = vmax.f32 %v291, 0.0
        %v308 = vmax.f32 %v293, 0.0
        %v309 = vmax.f32 %v297, 0.0
        %v310 = vmax.f32 %v299, 0.0
        %v311 = vmax.f32 %v301, 0.0
        %v312 = vmax.f32 %v303, 0.0
        %v313 = vpack.c.bf16 %v307, %v305
        %v314 = vpack.c.bf16 %v308, %v306
        %v315 = vpack.c.bf16 %v311, %v309
        %v316 = vpack.c.bf16 %v312, %v310
        %v321 = vunpack.c.l.b16 %v313
        %v322 = vunpack.c.l.b16 %v314
        %v323 = vunpack.c.h.b16 %v313
        %v324 = vunpack.c.h.b16 %v314
        %v325 = vunpack.c.l.b16 %v315
        %v326 = vunpack.c.l.b16 %v316
        %v327 = vunpack.c.h.b16 %v315
        %v328 = vunpack.c.h.b16 %v316
        %v329 = vpack.c.b16 %v322, %v321
        %v330 = vpack.c.b16 %v324, %v323
        %v331 = vpack.c.b16 %v326, %v325
        %v332 = vpack.c.b16 %v328, %v327
        %337 = vst [vmem:[%s188] sm:$0xff] %v329
        %338 = vst [vmem:[%s188 + $0x8] sm:$0xff] %v330
        %339 = vst [vmem:[%s188 + $0x10] sm:$0xff] %v331
        %340 = vst [vmem:[%s188 + $0x18] sm:$0xff] %v332
        %s341 = sand.u32 %s109, 1
        %s342 = scalar_lea.sflag [#allocation3], %s341
        %s343 = sand.u32 %s109, 1
        %s344 = smul.addr %s343, 32
        %s345 = scalar_lea.vmem [#allocation2], %s344
        // Predicated region
        $region33: #{conv_block.1} parent=31 // pred_check
          %p346 = pneg %p119
        $region34: #{conv_block.1} parent=31 // pred_check_branch
          %348 = sbr.rel (%p346) target = $region36
        $region35: #{conv_block.1} parent=31 // pred_region
          %s349 = smul.u32 2, %s22
          %s351 = ssub.s32 512, 512
          %352 = vsyncadd %s342, %s351
          %s353 = smul.addr %s21, 8
          %s354 = sadd.s32 %s349, %s353
          %s355 = smul.addr %s354, 64
          %s356 = scalar_lea.hbm %s3, %s355
          %s357 = sshll.u32 %s345, 4
          %s358 = int_to_ptr.vmem [resolvable:$true] %s357
          %363 = dma.vmem_to_hbm [thread:$0]  %s358, 512, %s356, %s342, 128, 128, 8
        $region36: #{conv_block.1} parent=31 // pred_fallthru
          _
      $region32: #{conv_block.1} parent=5 // pred_fallthru
        _
      %p364 = scmp.le.s32.totalorder 2, %s12
      // Predicated region
      $region37: #{conv_block.1} parent=5 // pred_check
        %p365 = pneg %p364
      $region38: #{conv_block.1} parent=5 // pred_check_branch
        %367 = sbr.rel (%p365) target = $region40
      $region39: #{conv_block.1} parent=5 // pred_region
        %s368 = ssub.s32 %s12, 2
        // Predicated region
        $region41: #{conv_block.1} parent=39 // pred_check
          %p369 = pneg %p125
        $region42: #{conv_block.1} parent=39 // pred_check_branch
          %371 = sbr.rel (%p369) target = $region44
        $region43: #{conv_block.1} parent=39 // pred_region
          %s372 = sand.u32 %s110, 1
          %s373 = scalar_lea.sflag [#allocation3], %s372
          %s374 = sand.u32 %s110, 1
          %s375 = smul.addr %s374, 32
          %s376 = scalar_lea.vmem [#allocation2], %s375
          %377 = dma.done %s373, 512
        $region44: #{conv_block.1} parent=39 // pred_fallthru
          _
      $region40: #{conv_block.1} parent=5 // pred_fallthru
        _
    $region6: #{conv_block.1} parent=1 // loop_footer
      %s16 = sadd.s32 1, %s12
    $region7: #{conv_block.1} parent=1 // loop_footer_branch
      %11 = sbr.rel target = $region3
    $region8: #{conv_block.1} parent=1 // loop_exit
      _
    %378 = vsyncpa [#allocation3], 1
    %s379 = scalar_lea.sflag [#allocation3], 1
    %380 = vsyncpa %s379, 1

</llo_original>
